<compile_context>
chip_gen: v5e
topology: v5e:2x2
jax: 0.10.0
libtpu: 0.0.40
codegen_flags: <defaults>
</compile_context>

<pallas_src>
import math

import jax
import jax.numpy as jnp
from jax.experimental import pallas as pl
from jax.experimental.pallas import tpu as pltpu

_MIB = 1024 * 1024


def make_positional_encoding_table(d_model: int, max_len: int) -> jnp.ndarray:
    """Deterministic pe buffer, shape (max_len, 1, d_model), float32."""
    position = jnp.arange(0, max_len, dtype=jnp.float32)[:, None]            # (max_len, 1)
    div_term = jnp.exp(
        jnp.arange(0, d_model, 2, dtype=jnp.float32) * (-math.log(10000.0) / d_model)
    )                                                                         # (ceil(d/2),)
    angles = position * div_term                                              # (max_len, ceil(d/2))
    pe = jnp.zeros((max_len, d_model), dtype=jnp.float32)
    pe = pe.at[:, 0::2].set(jnp.sin(angles))
    pe = pe.at[:, 1::2].set(jnp.cos(angles)[:, : d_model // 2])
    return pe[:, None, :]                                                     # (max_len, 1, d_model)


# ----------------------------------------------------------------------------- kernels
def _pe_kernel_3d(x_ref, pe_ref, o_ref):
    # x_ref/o_ref: (ts, bt, d_model); pe_ref: (ts, 1, d_model) f32.
    # The batch broadcast is a sublane broadcast -> pure VPU add, no temp tile.
    x = x_ref[...].astype(jnp.float32)
    o_ref[...] = (x + pe_ref[...]).astype(o_ref.dtype)


def _pe_kernel_flat(x_ref, pe_ref, o_ref):
    # x_ref/o_ref: (ts, batch * d_model) lane-dense; pe_ref: (ts, d_model) f32.
    reps = x_ref.shape[-1] // pe_ref.shape[-1]
    pe = jnp.tile(pe_ref[...], (1, reps))
    o_ref[...] = (x_ref[...].astype(jnp.float32) + pe).astype(o_ref.dtype)


# ----------------------------------------------------------------------------- sizing
def _vmem_budget():
    """(vmem_limit_bytes, target_x_block_bytes) for this TPU generation."""
    try:
        cap = int(pltpu.get_tpu_info().vmem_capacity_bytes)
    except Exception:
        cap = 0
    if cap and cap <= 80 * _MIB:        # v7x-like: 64 MiB physical per TensorCore
        return 32 * _MIB, 4 * _MIB
    if cap:                             # v5e / v6e: 128 MiB physical
        return 64 * _MIB, 8 * _MIB
    return 32 * _MIB, 4 * _MIB          # unknown backend: stay conservative


def _row_align(itemsize: int) -> int:
    # Native sublane packing: 8 rows f32, 16 bf16, 32 int8/fp8.
    return {4: 8, 2: 16, 1: 32}.get(itemsize, 8)


def _choose_tiles(seq, batch, d_model, itemsize, vmem_limit, target_x, row_align, flat):
    """Pick (seq_tile, batch_tile) from the VMEM budget + per-generation block target."""
    budget = int(vmem_limit * 0.6)                 # headroom for compiler scratch
    d_bytes = d_model * itemsize
    k_temps = 3 if flat else 2                     # f32 temps (+ tiled-pe temp on flat path)
    c1 = 4 * d_bytes + k_temps * d_model * 4       # bytes per (seq row, batch row): 2x(x+out)+temps
    c0 = 2 * d_model * 4                           # double-buffered f32 pe row

    # Batch tiling (3-D path only): split batch when even a row_align-deep block
    # of the full batch cannot double-buffer inside the budget.
    bt = batch
    if (not flat) and batch > 8 and row_align * (batch * c1 + c0) > budget:
        bt_max = (budget // row_align - c0) // max(c1, 1)
        bt = min(batch, max(8, (bt_max // 8) * 8))

    row_bytes = bt * c1 + c0
    x_row = bt * d_bytes
    ts = max(1, budget // max(row_bytes, 1))
    # Cap the x block at ~target_x bytes so realistic seq lengths give many
    # grid steps (software pipelining; megacore sharding on v7x).
    ts = min(ts, max(row_align, target_x // max(x_row, 1)))
    ts = max(row_align, (ts // row_align) * row_align)

    if ts >= seq:
        if seq >= 2 * row_align:
            # Keep >= 2 grid steps so both v7x TensorCores get work; the extra
            # ~0.35us per step is negligible on single-core chips.
            half = -(-seq // 2)
            ts = ((half + row_align - 1) // row_align) * row_align
        else:
            ts = seq
    return min(ts, seq), bt


# ----------------------------------------------------------------------------- wrapper
def positional_encoding(x: jnp.ndarray, pe_table: jnp.ndarray, *,
                        seq_tile=None, batch_tile=None) -> jnp.ndarray:
    """x: (seq, batch, d_model); pe_table: (max_len, 1, d_model) f32. Returns x + pe[:seq]."""
    seq, batch, d_model = x.shape
    max_len = pe_table.shape[0]
    if seq > max_len:
        raise ValueError(f"seq={seq} exceeds pe table max_len={max_len}")
    if pe_table.shape[2] != d_model:
        raise ValueError("pe_table d_model mismatch")
    if pe_table.dtype != jnp.float32:
        pe_table = pe_table.astype(jnp.float32)

    vmem_limit, target_x = _vmem_budget()
    itemsize = jnp.dtype(x.dtype).itemsize
    row_align = _row_align(itemsize)
    flat = (d_model % 128) != 0

    ts, bt = _choose_tiles(seq, batch, d_model, itemsize, vmem_limit, target_x,
                           row_align, flat)
    if seq_tile is not None:
        ts = min(int(seq_tile), seq)
        if ts < seq:
            ts = max(row_align, (ts // row_align) * row_align)   # keeps the (8,128) rule
    if (batch_tile is not None) and not flat:
        bt = min(int(batch_tile), batch)
        if bt < batch:
            bt = max(8, (bt // 8) * 8)

    num_seq_blocks = pl.cdiv(seq, ts)

    if flat:
        # Lane-dense flattened layout; pe broadcast across batch in-kernel.
        width = batch * d_model
        x2 = x.reshape(seq, width)                     # contiguous collapse: free
        out2 = pl.pallas_call(
            _pe_kernel_flat,
            out_shape=jax.ShapeDtypeStruct((seq, width), x.dtype),
            grid=(num_seq_blocks,),
            in_specs=[
                pl.BlockSpec((ts, width), lambda i: (i, 0)),
                # full (max_len, 1, d_model) table: middle dim squeezed, no host-side slice copy
                pl.BlockSpec((ts, None, d_model), lambda i: (i, 0, 0)),
            ],
            out_specs=pl.BlockSpec((ts, width), lambda i: (i, 0)),
            compiler_params=pltpu.CompilerParams(
                dimension_semantics=("parallel",),
                vmem_limit_bytes=vmem_limit),
        )(x2, pe_table)
        return out2.reshape(seq, batch, d_model)

    # 3-D path: d_model is lane-aligned; broadcast over the batch sublane axis.
    num_batch_blocks = pl.cdiv(batch, bt)
    return pl.pallas_call(
        _pe_kernel_3d,
        out_shape=jax.ShapeDtypeStruct((seq, batch, d_model), x.dtype),
        grid=(num_seq_blocks, num_batch_blocks),
        in_specs=[
            pl.BlockSpec((ts, bt, d_model), lambda i, j: (i, j, 0)),
            pl.BlockSpec((ts, 1, d_model), lambda i, j: (i, 0, 0)),
        ],
        out_specs=pl.BlockSpec((ts, bt, d_model), lambda i, j: (i, j, 0)),
        compiler_params=pltpu.CompilerParams(
            dimension_semantics=("parallel", "parallel"),
            vmem_limit_bytes=vmem_limit),
    )(x, pe_table)


# ----------------------------------------------------------------------------- demo / checks
if __name__ == "__main__":
    key = jax.random.PRNGKey(0)
    results = []

    # 1) Flat path (d_model % 128 != 0), small single-block shape.
    d_model, max_len = 32, 128
    pe = make_positional_encoding_table(d_model, max_len)
    seq, batch = 8, 2
    x = jax.random.normal(key, (seq, batch, d_model), dtype=jnp.float32)
    out = positional_encoding(x, pe)
    results.append(out)
    assert out.shape == (seq, batch, d_model)
    assert jnp.allclose(out, x + pe[:seq], atol=1e-6), "flat single-block mismatch"

    # 2) Flat path, non-dividing seq (partial last block, no padding pass).
    seq2 = 40
    x2 = jax.random.normal(key, (seq2, batch, d_model), jnp.float32)
    out2 = positional_encoding(x2, pe, seq_tile=16)
    results.append(out2)
    assert jnp.allclose(out2, x2 + pe[:seq2], atol=1e-6), "flat tiled/tail mismatch"

    # 3) 3-D broadcast path (d_model % 128 == 0), auto-tiled into >= 2 seq blocks.
    d3 = 128
    pe3 = make_positional_encoding_table(d3, max_len)
    seq3, batch3 = 24, 4
    x3 = jax.random.normal(key, (seq3, batch3, d3), jnp.float32)
    out3 = positional_encoding(x3, pe3)
    results.append(out3)
    assert jnp.allclose(out3, x3 + pe3[:seq3], atol=1e-6), "3-D path mismatch"

    # 4) 3-D path with batch tiling (2-D parallel grid).
    seq4, batch4 = 16, 16
    x4 = jax.random.normal(key, (seq4, batch4, d3), jnp.float32)
    out4 = positional_encoding(x4, pe3, batch_tile=8)
    results.append(out4)
    assert jnp.allclose(out4, x4 + pe3[:seq4], atol=1e-6), "batch-tiled mismatch"

    # 5) bf16 activations: add in f32 (pe kept f32), cast only on store.
    seq5 = 24
    x5 = jax.random.normal(key, (seq5, 2, d3), jnp.float32).astype(jnp.bfloat16)
    out5 = positional_encoding(x5, pe3)
    results.append(out5)
    ref5 = (x5.astype(jnp.float32) + pe3[:seq5]).astype(jnp.bfloat16)
    assert out5.dtype == jnp.bfloat16
    assert jnp.allclose(out5.astype(jnp.float32), ref5.astype(jnp.float32),
                        atol=1e-2), "bf16 mismatch"

    jax.block_until_ready(results)
    print("KERNEL_OK")
</pallas_src>

<mosaic_0001>
module attributes {stable_mosaic.version = 11 : i64} {
  func.func @_pe_kernel_flat(%arg0: i32, %arg1: memref<8x64xf32, #tpu.memory_space<vmem>>, %arg2: memref<8x1x32xf32, #tpu.memory_space<vmem>>, %arg3: memref<8x64xf32, #tpu.memory_space<vmem>>) attributes {dimension_semantics = [#tpu.dimension_semantics<parallel>], iteration_bounds = array<i64: 1>, scalar_prefetch = 0 : i64, scratch_operands = 0 : i64, tpu.core_type = #tpu.core_type<tc>, window_params = [{transform_indices = @transform_0, window_bounds = array<i64: 8, 64>}, {transform_indices = @transform_1, window_bounds = array<i64: 8, 1, 32>}, {transform_indices = @transform_2, window_bounds = array<i64: 8, 64>}]} {
    %c0 = arith.constant 0 : index
    %c0_0 = arith.constant 0 : index
    %c0_1 = arith.constant 0 : index
    %0 = vector.load %arg2[%c0, %c0_0, %c0_1] : memref<8x1x32xf32, #tpu.memory_space<vmem>>, vector<8x1x32xf32>
    %1 = vector.shape_cast %0 : vector<8x1x32xf32> to vector<8x32xf32>
    %2 = tpu.concatenate %1, %1 in 1 : vector<8x32xf32>, vector<8x32xf32> -> vector<8x64xf32>
    %c0_2 = arith.constant 0 : index
    %c0_3 = arith.constant 0 : index
    %3 = vector.load %arg1[%c0_2, %c0_3] : memref<8x64xf32, #tpu.memory_space<vmem>>, vector<8x64xf32>
    %4 = arith.addf %3, %2 : vector<8x64xf32>
    %c0_4 = arith.constant 0 : index
    %c0_5 = arith.constant 0 : index
    %5 = vector.load %arg3[%c0_4, %c0_5] : memref<8x64xf32, #tpu.memory_space<vmem>>, vector<8x64xf32>
    tpu.vector_store %arg3[%c0_4, %c0_5], %4 {strides = array<i32>} : memref<8x64xf32, #tpu.memory_space<vmem>>, vector<8x64xf32>,
    return
  }
  func.func @transform_0(%arg0: i32) -> (i32, i32) {
    %c0_i32 = arith.constant 0 : i32
    %c0_i32_0 = arith.constant 0 : i32
    return %arg0, %c0_i32 : i32, i32
  }
  func.func @transform_1(%arg0: i32) -> (i32, i32, i32) {
    %c0_i32 = arith.constant 0 : i32
    %c0_i32_0 = arith.constant 0 : i32
    %c0_i32_1 = arith.constant 0 : i32
    return %arg0, %c0_i32, %c0_i32_0 : i32, i32, i32
  }
  func.func @transform_2(%arg0: i32) -> (i32, i32) {
    %c0_i32 = arith.constant 0 : i32
    %c0_i32_0 = arith.constant 0 : i32
    return %arg0, %c0_i32 : i32, i32
  }
}

</mosaic_0001>

<llo_original>
// kernel: tpu_custom_call.1
$region0: #{tpu_custom_call.1}
  #allocation0 [shape = 'u32[]', space=smem, size = 0x4, offset = 0x4, fixed_abs, tag = 'smem constant byte address 0x4 - core index']
  #allocation1 [shape = 'u32[72,128]{1,0:T(1,128)}', space=vmem, size = 0x9000, scoped, tag = 'internal scratch']
  %s0 = inlined_call_operand.vmem [shape: f32[8,64], index: 0, kind: input, shape index: {}]
  %s1 = inlined_call_operand.vmem [shape: f32[128,1,32], index: 1, kind: input, shape index: {}]
  %s2 = inlined_call_operand.hbm [shape: f32[8,64], index: 2, kind: output, shape index: {}]
  %s3 = sld [smem:[#allocation0]]
  $region18: #{tpu_custom_call.1} parent=0
    _
  %s5 = ssub.s32 1, %s3
  %s6 = scalar_select 0, %s5, %s3
  $region1: #{tpu_custom_call.1} parent=0
    #allocation2 [shape = 'u8[4096]{0}', space=vmem, size = 0x1000, scoped, tag = 'output window, operand 0, single buffered']
    #allocation3 [shape = 's32[1]{0}', space=sflag, size = 0x4, scoped, tag = 'scoped memory for tpu_custom_call.1']
    %7 = vsyncpa [#allocation3], 0
    // Predicated region
    $region2: #{tpu_custom_call.1} parent=1 // pred_check
      _
    $region3: #{tpu_custom_call.1} parent=1 // pred_check_branch
      %9 = sbr.rel (0) target = $region5
    $region4: #{tpu_custom_call.1} parent=1 // pred_region
      _
    $region5: #{tpu_custom_call.1} parent=1 // pred_fallthru
      _
    // Predicated region
    $region6: #{tpu_custom_call.1} parent=1 // pred_check
      _
    $region7: #{tpu_custom_call.1} parent=1 // pred_check_branch
      %11 = sbr.rel (0) target = $region9
    $region8: #{tpu_custom_call.1} parent=1 // pred_region
      _
    $region9: #{tpu_custom_call.1} parent=1 // pred_fallthru
      _
    %v12 = vld [vmem:[%s1] sm:$0x1]
    %v13 = vld [vmem:[%s1 + $0x1] sm:$0x1]
    %v14 = vld [vmem:[%s1 + $0x2] sm:$0x1]
    %v15 = vld [vmem:[%s1 + $0x3] sm:$0x1]
    %v16 = vld [vmem:[%s1 + $0x4] sm:$0x1]
    %v17 = vld [vmem:[%s1 + $0x5] sm:$0x1]
    %v18 = vld [vmem:[%s1 + $0x6] sm:$0x1]
    %v19 = vld [vmem:[%s1 + $0x7] sm:$0x1]
    %28 = vst [vmem:[#allocation1] ss:$9 sm:$0xff] %v12
    %s29 = scalar_lea.vmem [#allocation1], 1
    %30 = vst [vmem:[%s29] ss:$9 sm:$0xff] %v13
    %s31 = scalar_lea.vmem [#allocation1], 2
    %32 = vst [vmem:[%s31] ss:$9 sm:$0xff] %v14
    %s33 = scalar_lea.vmem [#allocation1], 3
    %34 = vst [vmem:[%s33] ss:$9 sm:$0xff] %v15
    %s35 = scalar_lea.vmem [#allocation1], 4
    %36 = vst [vmem:[%s35] ss:$9 sm:$0xff] %v16
    %s37 = scalar_lea.vmem [#allocation1], 5
    %38 = vst [vmem:[%s37] ss:$9 sm:$0xff] %v17
    %s39 = scalar_lea.vmem [#allocation1], 6
    %40 = vst [vmem:[%s39] ss:$9 sm:$0xff] %v18
    %s41 = scalar_lea.vmem [#allocation1], 7
    %42 = vst [vmem:[%s41] ss:$9 sm:$0xff] %v19
    %v43 = vld [vmem:[#allocation1] sm:$0xff]
    %45 = vst [vmem:[#allocation1] ss:$9 sm:$0xff] %v12
    %s46 = scalar_lea.vmem [#allocation1], 1
    %47 = vst [vmem:[%s46] ss:$9 sm:$0xff] %v13
    %s48 = scalar_lea.vmem [#allocation1], 2
    %49 = vst [vmem:[%s48] ss:$9 sm:$0xff] %v14
    %s50 = scalar_lea.vmem [#allocation1], 3
    %51 = vst [vmem:[%s50] ss:$9 sm:$0xff] %v15
    %s52 = scalar_lea.vmem [#allocation1], 4
    %53 = vst [vmem:[%s52] ss:$9 sm:$0xff] %v16
    %s54 = scalar_lea.vmem [#allocation1], 5
    %55 = vst [vmem:[%s54] ss:$9 sm:$0xff] %v17
    %s56 = scalar_lea.vmem [#allocation1], 6
    %57 = vst [vmem:[%s56] ss:$9 sm:$0xff] %v18
    %s58 = scalar_lea.vmem [#allocation1], 7
    %59 = vst [vmem:[%s58] ss:$9 sm:$0xff] %v19
    %v60 = vld [vmem:[#allocation1] sm:$0xff]
    %61 = vrot.lane.b32.xlu0 %v60, 32
    %v62 = vpop.permute.xlu0 %61
    %vm64 = vcmask 261120
    %v65 = vsel %vm64, %v43, %v62
    %v66 = vld [vmem:[%s0] sm:$0xff]
    %v67 = vadd.f32 %v66, %v65
    %vm68 = vcmask 523264
    %69 = vst.msk [vmem:[#allocation2] sm:$0xff] %vm68, %v67
    // Predicated region
    $region10: #{tpu_custom_call.1} parent=1 // pred_check
      _
    $region11: #{tpu_custom_call.1} parent=1 // pred_check_branch
      %71 = sbr.rel (0) target = $region13
    $region12: #{tpu_custom_call.1} parent=1 // pred_region
      %73 = vsyncadd [#allocation3], 0
      %s75 = sshll.u32 [#allocation2], 4
      %s76 = int_to_ptr.vmem [resolvable:$true] %s75
      %s77 = sshll.u32 %s2, 4
      %s78 = int_to_ptr.hbm [resolvable:$true] %s77
      %80 = dma.vmem_to_hbm [thread:$0]  %s76, 128, %s78, [#allocation3]
    $region13: #{tpu_custom_call.1} parent=1 // pred_fallthru
      _
    // Predicated region
    $region14: #{tpu_custom_call.1} parent=1 // pred_check
      _
    $region15: #{tpu_custom_call.1} parent=1 // pred_check_branch
      %82 = sbr.rel (0) target = $region17
    $region16: #{tpu_custom_call.1} parent=1 // pred_region
      %84 = dma.done [#allocation3], 128
    $region17: #{tpu_custom_call.1} parent=1 // pred_fallthru
      _
    %85 = vsyncpa [#allocation3], 1

</llo_original>
